<compile_context>
chip_gen: v5e
topology: v5e:2x2
jax: 0.10.0
libtpu: 0.0.40
codegen_flags: <defaults>
</compile_context>

<pallas_src>
import jax
import jax.numpy as jnp
from jax.experimental import pallas as pl
from jax.experimental.pallas import tpu as pltpu


def _cdiv(a, b):
    return -(-a // b)


def _divisors(n):
    ds = set()
    d = 1
    while d * d <= n:
        if n % d == 0:
            ds.add(d)
            ds.add(n // d)
        d += 1
    return sorted(ds)


def _tpu_vmem_bytes(default=64 << 20):
    """Physical VMEM per core; conservative default (v7x) if the query fails."""
    try:
        info = pltpu.get_tpu_info()
        return int(getattr(info, "vmem_capacity_bytes", default))
    except Exception:
        return default


def _upsample_kernel(x_ref, sel_ref, o_ref):
    """x_ref: (TR, G*W) folded input rows; sel_ref: (G*W, 4*G*W) resident 0/1
    selection matrix; o_ref: (TR, 4*G*W) folded output super-rows.

    Each output element is a single 1*x product (or an untouched zero), so the
    result is exact for f32/bf16.  One MXU matmul per tile; sel is fetched only
    once (constant block index) so the per-step cost is just DMA + matmul.
    """
    o_ref[...] = jnp.dot(
        x_ref[...], sel_ref[...], preferred_element_type=jnp.float32
    ).astype(o_ref.dtype)


def upsample(x):
    """x: (N, C, H, W) -> (N, C, 2H, 2W) with zeros at odd rows/columns."""
    N, C, H, W = x.shape
    rows = N * C * H
    itemsize = jnp.dtype(x.dtype).itemsize

    # --- choose G: fold G consecutive input rows per super-row so the folded
    # output minor dim (4*G*W elements) is a multiple of 128 lanes (unmasked
    # stores) and >= 128.  G must divide rows so the fold is a free reshape.
    desired_g = max(1, _cdiv(128, 2 * W))
    divs = _divisors(rows)
    lane_ok = [d for d in divs
               if d >= desired_g and (d * W) % 32 == 0 and d * W <= 1024]
    ge = [d for d in divs if d >= desired_g and d * W <= 1024]
    le = [d for d in divs if d <= desired_g]
    if lane_ok:
        G = lane_ok[0]
    elif ge:
        G = ge[0]
    else:
        G = le[-1]          # sacrifice some lane density (awkward row counts)

    GW = G * W
    OW = 4 * GW
    super_rows = rows // G
    in_row_bytes = GW * itemsize
    out_row_bytes = OW * itemsize
    s_bytes = GW * OW * itemsize

    phys_vmem = _tpu_vmem_bytes()
    vmem_cap = (phys_vmem * 3) // 4          # leave headroom (48 MiB on v7x)

    def _vmem_need(tr):
        # double-buffered in/out tiles + (double-buffered) resident sel + slack
        return 2 * tr * (in_row_bytes + out_row_bytes) + 2 * s_bytes + (2 << 20)

    # --- choose TR (super-rows per grid step): ~4 MiB of output per step,
    # multiple of the sublane packing, cdiv grid (partial last block is fine).
    row_align = max(8, 32 // itemsize)       # 8 f32, 16 bf16, 32 int8/fp8
    target_tile_bytes = 4 << 20
    if super_rows <= row_align:
        TR = super_rows
    else:
        TR = min(max(1, target_tile_bytes // out_row_bytes), super_rows)
        TR = max(row_align, (TR // row_align) * row_align)
        # Keep >= 2 steps when there is enough work (pipelining / megacore).
        if _cdiv(super_rows, TR) < 2 and super_rows >= 2 * row_align:
            TR = row_align * _cdiv(_cdiv(super_rows, 2), row_align)
        # Bias toward an even step count (no odd tail step on dual-TC chips).
        steps = _cdiv(super_rows, TR)
        if steps > 2 and steps % 2 == 1:
            tr2 = row_align * _cdiv(_cdiv(super_rows, steps + 1), row_align)
            if tr2 >= row_align and _cdiv(super_rows, tr2) % 2 == 0:
                TR = tr2
        # Shrink if the tiles + resident sel would not fit in VMEM (v7x: 64 MiB).
        while _vmem_need(TR) > vmem_cap and TR > row_align:
            TR = max(row_align, ((TR // 2) // row_align) * row_align)

    grid = (_cdiv(super_rows, TR),)
    vmem_limit = int(min(max(_vmem_need(TR), 16 << 20),
                         max(phys_vmem - (4 << 20), 16 << 20)))

    # --- build the 0/1 "dilate columns + insert zero rows" matrix once on the
    # host (never rebuilt per grid step; div/mod here costs nothing):
    #   sel[p, q] = 1  iff  q == 4*W*(p // W) + 2*(p % W)
    p = jnp.arange(GW)
    q = jnp.arange(OW)
    sel = (q[None, :] ==
           (p[:, None] // W) * (4 * W) + (p[:, None] % W) * 2).astype(x.dtype)

    x_folded = x.reshape(super_rows, GW)     # free (contiguous) reshape

    out_folded = pl.pallas_call(
        _upsample_kernel,
        out_shape=jax.ShapeDtypeStruct((super_rows, OW), x.dtype),
        grid=grid,
        in_specs=[
            pl.BlockSpec((TR, GW), lambda i: (i, 0)),
            # Constant block index: fetched once per TensorCore, stays resident.
            pl.BlockSpec((GW, OW), lambda i: (0, 0)),
        ],
        out_specs=pl.BlockSpec((TR, OW), lambda i: (i, 0)),
        compiler_params=pltpu.CompilerParams(
            dimension_semantics=("parallel",),
            vmem_limit_bytes=vmem_limit,
        ),
        cost_estimate=pl.CostEstimate(
            flops=2 * super_rows * GW * OW,
            transcendentals=0,
            # read x, read sel once, write 4x-sized output
            bytes_accessed=int(x.size * itemsize * 5 + s_bytes),
        ),
    )(x_folded, sel)

    # Contiguous (free) reshape back to NCHW: the super-row layout already
    # matches the row-major layout of the dilated output.
    return out_folded.reshape(N, C, 2 * H, 2 * W)


if __name__ == "__main__":
    key = jax.random.PRNGKey(0)
    N, C, H, W = 2, 4, 16, 16
    x = jax.random.normal(key, (N, C, H, W), dtype=jnp.float32)

    out = jax.block_until_ready(upsample(x))

    # Pure-JAX reference of the PyTorch module's semantics.
    ref = jnp.zeros((N, C, 2 * H, 2 * W), x.dtype).at[:, :, ::2, ::2].set(x)

    assert out.shape == (N, C, 2 * H, 2 * W)
    assert out.dtype == x.dtype
    assert jnp.array_equal(out, ref)
    print("KERNEL_OK")
</pallas_src>

<mosaic_0001>
module attributes {stable_mosaic.version = 11 : i64} {
  func.func @_upsample_kernel(%arg0: i32, %arg1: memref<16x64xf32, #tpu.memory_space<vmem>>, %arg2: memref<64x256xf32, #tpu.memory_space<vmem>>, %arg3: memref<16x256xf32, #tpu.memory_space<vmem>>) attributes {dimension_semantics = [#tpu.dimension_semantics<parallel>], iteration_bounds = array<i64: 2>, scalar_prefetch = 0 : i64, scratch_operands = 0 : i64, tpu.core_type = #tpu.core_type<tc>, window_params = [{transform_indices = @transform_0, window_bounds = array<i64: 16, 64>}, {pipeline_mode = #tpu.pipeline_mode<synchronous>, transform_indices = @transform_1, window_bounds = array<i64: 64, 256>}, {transform_indices = @transform_2, window_bounds = array<i64: 16, 256>}]} {
    %c0 = arith.constant 0 : index
    %c0_0 = arith.constant 0 : index
    %0 = vector.load %arg1[%c0, %c0_0] : memref<16x64xf32, #tpu.memory_space<vmem>>, vector<16x64xf32>
    %c0_1 = arith.constant 0 : index
    %c0_2 = arith.constant 0 : index
    %1 = vector.load %arg2[%c0_1, %c0_2] : memref<64x256xf32, #tpu.memory_space<vmem>>, vector<64x256xf32>
    %cst = arith.constant dense<0.000000e+00> : vector<16x256xf32>
    %2 = tpu.matmul %0, %1, %cst {dimension_numbers = #tpu.dot_dimension_numbers<[1], [0], [0], [1], [0, 0, 1, 1], [], []>} : vector<16x64xf32>, vector<64x256xf32>, vector<16x256xf32> -> vector<16x256xf32>
    %c0_3 = arith.constant 0 : index
    %c0_4 = arith.constant 0 : index
    %3 = vector.load %arg3[%c0_3, %c0_4] : memref<16x256xf32, #tpu.memory_space<vmem>>, vector<16x256xf32>
    tpu.vector_store %arg3[%c0_3, %c0_4], %2 {strides = array<i32>} : memref<16x256xf32, #tpu.memory_space<vmem>>, vector<16x256xf32>,
    return
  }
  func.func @transform_0(%arg0: i32) -> (i32, i32) {
    %c0_i32 = arith.constant 0 : i32
    %c0_i32_0 = arith.constant 0 : i32
    return %arg0, %c0_i32 : i32, i32
  }
  func.func @transform_1(%arg0: i32) -> (i32, i32) {
    %c0_i32 = arith.constant 0 : i32
    %c0_i32_0 = arith.constant 0 : i32
    %c0_i32_1 = arith.constant 0 : i32
    return %c0_i32, %c0_i32_0 : i32, i32
  }
  func.func @transform_2(%arg0: i32) -> (i32, i32) {
    %c0_i32 = arith.constant 0 : i32
    %c0_i32_0 = arith.constant 0 : i32
    return %arg0, %c0_i32 : i32, i32
  }
}

</mosaic_0001>

<llo_original>
// kernel: tpu_custom_call.1
$region0: #{tpu_custom_call.1}
  #allocation0 [shape = 'u32[]', space=smem, size = 0x4, offset = 0x4, fixed_abs, tag = 'smem constant byte address 0x4 - core index']
  #allocation1 [shape = 'u32[72,128]{1,0:T(1,128)}', space=vmem, size = 0x9000, scoped, tag = 'internal scratch']
  %s0 = inlined_call_operand.hbm [shape: f32[32,64], index: 0, kind: input, shape index: {}]
  %s1 = inlined_call_operand.hbm [shape: f32[64,256], index: 1, kind: input, shape index: {}]
  %s2 = inlined_call_operand.hbm [shape: f32[32,256], index: 2, kind: output, shape index: {}]
  %s3 = sld [smem:[#allocation0]]
  $region49: #{tpu_custom_call.1} parent=0
    _
  %s5 = ssub.s32 1, %s3
  %s6 = scalar_select 0, %s5, %s3
  $region1: #{tpu_custom_call.1} parent=0
    #allocation2 [shape = 'u8[16384]{0}', space=vmem, size = 0x4000, scoped, tag = 'input window, operand 0']
    #allocation3 [shape = 's32[2]{0}', space=sflag, size = 0x8, scoped, tag = 'scoped memory for tpu_custom_call.1']
    #allocation4 [shape = 's32[2]{0}', space=sflag, size = 0x8, scoped, tag = 'scoped memory for tpu_custom_call.1']
    #allocation5 [shape = 'u8[65536]{0}', space=vmem, size = 0x10000, scoped, tag = 'input window, operand 1, single buffered']
    #allocation6 [shape = 's32[1]{0}', space=sflag, size = 0x4, scoped, tag = 'scoped memory for tpu_custom_call.1']
    #allocation7 [shape = 'u8[32768]{0}', space=vmem, size = 0x8000, scoped, tag = 'output window, operand 0']
    %7 = vsyncpa [#allocation3], 0
    %s8 = scalar_lea.sflag [#allocation3], 1
    %9 = vsyncpa %s8, 0
    %10 = vsyncpa [#allocation6], 0
    %11 = vsyncpa [#allocation4], 0
    %s12 = scalar_lea.sflag [#allocation4], 1
    %13 = vsyncpa %s12, 0
    loop: start=0, step=1, limit=4
    $region2: #{tpu_custom_call.1} parent=1 // loop_pre_header
      _
    $region3: #{tpu_custom_call.1} parent=1 // loop_header
      %s15 = sphi 0, %s19
      %p16 = scmp.ge.s32.totalorder %s15, 4
      %s25 = sphi 0, %s27
      %s28 = sphi 0, %s25
      %s29 = sphi 0, %s28
      %s45 = sphi 0, %s29
      %s49 = sphi 0, %s49
      %s51 = sphi 0, %s49
      %s52 = sphi 0, %s51
      %s66 = sphi 0, %s52
      %s72 = sphi 0, %s74
      %s75 = sphi 0, %s72
      %s76 = sphi 0, %s75
      %s92 = sphi 0, %s76
    $region4: #{tpu_custom_call.1} parent=1 // loop_header_branch
      %18 = sbr.rel (%p16) target = $region8
    $region5: #{tpu_custom_call.1} parent=1 // loop_body
      %s20 = ssub.s32 %s15, 1
      %s21 = ssub.s32 %s15, 2
      %s22 = sadd.s32 %s15, 1
      %s23 = ssub.s32 %s15, %s22
      %p24 = scmp.eq.s32.totalorder %s23, 0
      %s26 = sadd.s32 %s25, 1
      %s27 = scalar_select %p24, %s25, %s26
      %p30 = pneg %p24
      %p31 = scmp.eq.s32.totalorder %s15, 1
      %p32 = por %p30, %p31
      %p33 = scmp.ne.s32.totalorder %s25, %s28
      %p34 = scmp.eq.s32.totalorder %s15, 0
      %p35 = por %p33, %p34
      %p36 = scmp.ne.s32.totalorder %s25, %s28
      %p37 = scmp.eq.s32.totalorder %s20, 1
      %p38 = por %p36, %p37
      %p39 = scmp.ne.s32.totalorder %s28, %s29
      %p40 = scmp.eq.s32.totalorder %s20, 0
      %p41 = por %p39, %p40
      %p42 = scmp.ne.s32.totalorder %s28, %s29
      %p43 = scmp.eq.s32.totalorder %s21, 1
      %p44 = por %p42, %p43
      %p46 = scmp.ne.s32.totalorder %s29, %s45
      %p47 = scmp.eq.s32.totalorder %s21, 0
      %p48 = por %p46, %p47
      %s50 = sadd.s32 %s49, 1
      %p53 = scmp.eq.s32.totalorder %s15, 1
      %p54 = scmp.ne.s32.totalorder %s49, %s51
      %p55 = scmp.eq.s32.totalorder %s15, 0
      %p56 = por %p54, %p55
      %p57 = scmp.ne.s32.totalorder %s49, %s51
      %p58 = scmp.eq.s32.totalorder %s20, 1
      %p59 = por %p57, %p58
      %p60 = scmp.ne.s32.totalorder %s51, %s52
      %p61 = scmp.eq.s32.totalorder %s20, 0
      %p62 = por %p60, %p61
      %p63 = scmp.ne.s32.totalorder %s51, %s52
      %p64 = scmp.eq.s32.totalorder %s21, 1
      %p65 = por %p63, %p64
      %p67 = scmp.ne.s32.totalorder %s52, %s66
      %p68 = scmp.eq.s32.totalorder %s21, 0
      %p69 = por %p67, %p68
      %s70 = ssub.s32 %s15, %s22
      %p71 = scmp.eq.s32.totalorder %s70, 0
      %s73 = sadd.s32 %s72, 1
      %s74 = scalar_select %p71, %s72, %s73
      %p77 = pneg %p71
      %p78 = scmp.eq.s32.totalorder %s15, 1
      %p79 = por %p77, %p78
      %p80 = scmp.ne.s32.totalorder %s72, %s75
      %p81 = scmp.eq.s32.totalorder %s15, 0
      %p82 = por %p80, %p81
      %p83 = scmp.ne.s32.totalorder %s72, %s75
      %p84 = scmp.eq.s32.totalorder %s20, 1
      %p85 = por %p83, %p84
      %p86 = scmp.ne.s32.totalorder %s75, %s76
      %p87 = scmp.eq.s32.totalorder %s20, 0
      %p88 = por %p86, %p87
      %p89 = scmp.ne.s32.totalorder %s75, %s76
      %p90 = scmp.eq.s32.totalorder %s21, 1
      %p91 = por %p89, %p90
      %p93 = scmp.ne.s32.totalorder %s76, %s92
      %p94 = scmp.eq.s32.totalorder %s21, 0
      %p95 = por %p93, %p94
      %p96 = scmp.le.s32.totalorder 1, %s15
      %p97 = scmp.lt.s32.totalorder %s15, 3
      %p98 = pnand %p96, %p97
      %p99 = pneg %p98
      // Predicated region
      $region9: #{tpu_custom_call.1} parent=5 // pred_check
        _
      $region10: #{tpu_custom_call.1} parent=5 // pred_check_branch
        %101 = sbr.rel (%p98) target = $region12
      $region11: #{tpu_custom_call.1} parent=5 // pred_region
        %s102 = ssub.s32 %s15, 1
        // Predicated region
        $region13: #{tpu_custom_call.1} parent=11 // pred_check
          %p103 = pneg %p62
        $region14: #{tpu_custom_call.1} parent=11 // pred_check_branch
          %105 = sbr.rel (%p103) target = $region16
        $region15: #{tpu_custom_call.1} parent=11 // pred_region
          %107 = vsyncadd [#allocation6], 0
          %s108 = sshll.u32 %s1, 4
          %s109 = int_to_ptr.hbm [resolvable:$true] %s108
          %s110 = sshll.u32 [#allocation5], 4
          %s111 = int_to_ptr.vmem [resolvable:$true] %s110
          %116 = dma.hbm_to_vmem [thread:$0]  %s109, 2048, %s111, [#allocation6], 256, 256, 16
        $region16: #{tpu_custom_call.1} parent=11 // pred_fallthru
          _
      $region12: #{tpu_custom_call.1} parent=5 // pred_fallthru
        _
      %p117 = scmp.lt.s32.totalorder %s15, 2
      // Predicated region
      $region17: #{tpu_custom_call.1} parent=5 // pred_check
        %p118 = pneg %p117
      $region18: #{tpu_custom_call.1} parent=5 // pred_check_branch
        %120 = sbr.rel (%p118) target = $region20
      $region19: #{tpu_custom_call.1} parent=5 // pred_region
        // Predicated region
        $region21: #{tpu_custom_call.1} parent=19 // pred_check
          %p121 = pneg %p35
        $region22: #{tpu_custom_call.1} parent=19 // pred_check_branch
          %123 = sbr.rel (%p121) target = $region24
        $region23: #{tpu_custom_call.1} parent=19 // pred_region
          %s124 = sand.u32 %s25, 1
          %s125 = scalar_lea.sflag [#allocation3], %s124
          %s126 = sand.u32 %s25, 1
          %s127 = smul.addr %s126, 16
          %s128 = scalar_lea.vmem [#allocation2], %s127
          %s129 = smul.u32 2, %s15
          %131 = vsyncadd %s125, 0
          %s132 = smul.addr %s129, 8
          %s133 = scalar_lea.hbm %s0, %s132
          %s134 = sshll.u32 %s133, 4
          %s135 = int_to_ptr.hbm [resolvable:$true] %s134
          %s136 = sshll.u32 %s128, 4
          %s137 = int_to_ptr.vmem [resolvable:$true] %s136
          %142 = dma.hbm_to_vmem [thread:$0]  %s135, 256, %s137, %s125, 128, 128, 8
        $region24: #{tpu_custom_call.1} parent=19 // pred_fallthru
          _
      $region20: #{tpu_custom_call.1} parent=5 // pred_fallthru
        _
      %p143 = scmp.le.s32.totalorder 1, %s15
      %p144 = scmp.lt.s32.totalorder %s15, 3
      %p145 = pnand %p143, %p144
      %p146 = pneg %p145
      // Predicated region
      $region25: #{tpu_custom_call.1} parent=5 // pred_check
        _
      $region26: #{tpu_custom_call.1} parent=5 // pred_check_branch
        %148 = sbr.rel (%p145) target = $region28
      $region27: #{tpu_custom_call.1} parent=5 // pred_region
        %s149 = ssub.s32 %s15, 1
        %s150 = sand.u32 %s28, 1
        %s151 = scalar_lea.sflag [#allocation3], %s150
        %s152 = sand.u32 %s28, 1
        %s153 = smul.addr %s152, 16
        %s154 = scalar_lea.vmem [#allocation2], %s153
        // Predicated region
        $region29: #{tpu_custom_call.1} parent=27 // pred_check
          %p155 = pneg %p41
        $region30: #{tpu_custom_call.1} parent=27 // pred_check_branch
          %157 = sbr.rel (%p155) target = $region32
        $region31: #{tpu_custom_call.1} parent=27 // pred_region
          %159 = dma.done %s151, 256
        $region32: #{tpu_custom_call.1} parent=27 // pred_fallthru
          _
        // Predicated region
        $region33: #{tpu_custom_call.1} parent=27 // pred_check
          %p160 = pneg %p62
        $region34: #{tpu_custom_call.1} parent=27 // pred_check_branch
          %162 = sbr.rel (%p160) target = $region36
        $region35: #{tpu_custom_call.1} parent=27 // pred_region
          %164 = dma.done [#allocation6], 2048
        $region36: #{tpu_custom_call.1} parent=27 // pred_fallthru
          _
        %s165 = sand.u32 %s28, 1
        %s166 = scalar_lea.sflag [#allocation3], %s165
        %s167 = sand.u32 %s28, 1
        %s168 = smul.addr %s167, 16
        %s169 = scalar_lea.vmem [#allocation2], %s168
        %p170 = pneg %p41
        %p171 = pneg %p38
        %p172 = pneg %p62
        %p173 = pneg %p59
        %p174 = pneg %p88
        %p175 = pneg %p85
        %s176 = sand.u32 %s75, 1
        %s177 = scalar_lea.sflag [#allocation4], %s176
        %s178 = sand.u32 %s75, 1
        %s179 = smul.addr %s178, 32
        %s180 = scalar_lea.vmem [#allocation7], %s179
        %s181 = smul.u32 2, %s20
        %s182 = smul.u32 2, %s20
        %v183 = vld [vmem:[%s154] sm:$0xff]
        %v184 = vld [vmem:[%s154 + $0x8] sm:$0xff]
        %v185 = vld [vmem:[#allocation5] sm:$0xff]
        %v186 = vld [vmem:[#allocation5 + $0x8] sm:$0xff]
        %v187 = vld [vmem:[#allocation5 + $0x10] sm:$0xff]
        %v188 = vld [vmem:[#allocation5 + $0x18] sm:$0xff]
        %v189 = vld [vmem:[#allocation5 + $0x20] sm:$0xff]
        %v190 = vld [vmem:[#allocation5 + $0x28] sm:$0xff]
        %v191 = vld [vmem:[#allocation5 + $0x30] sm:$0xff]
        %v192 = vld [vmem:[#allocation5 + $0x38] sm:$0xff]
        %v193 = vld [vmem:[#allocation5 + $0x40] sm:$0xff]
        %v194 = vld [vmem:[#allocation5 + $0x48] sm:$0xff]
        %v195 = vld [vmem:[#allocation5 + $0x50] sm:$0xff]
        %v196 = vld [vmem:[#allocation5 + $0x58] sm:$0xff]
        %v197 = vld [vmem:[#allocation5 + $0x60] sm:$0xff]
        %v198 = vld [vmem:[#allocation5 + $0x68] sm:$0xff]
        %v199 = vld [vmem:[#allocation5 + $0x70] sm:$0xff]
        %v200 = vld [vmem:[#allocation5 + $0x78] sm:$0xff]
        %vm201 = vcmask 523264
        %v203 = vsel %vm201, %v183, 0
        %v206 = vsel %vm201, %v184, 0
        %208 = vmatpush.msra.mxu0 0.0
        %209 = vmatpush.msra.mxu0 0.0
        %210 = vmatpush.msra.mxu0 0.0
        %211 = vmatpush.msra.mxu0 0.0
        %212 = vmatpush.msra.mxu0 0.0
        %213 = vmatpush.msra.mxu0 0.0
        %214 = vmatpush.msra.mxu0 0.0
        %215 = vmatpush.msra.mxu0 0.0
        %216 = vmatpush.msra.mxu0 %v199
        %217 = vmatpush.msra.mxu0 %v197
        %218 = vmatpush.msra.mxu0 %v195
        %219 = vmatpush.msra.mxu0 %v193
        %220 = vmatpush.msra.mxu0 %v191
        %221 = vmatpush.msra.mxu0 %v189
        %222 = vmatpush.msra.mxu0 %v187
        %223 = vmatpush.msra.mxu0 %v185
        %224 = vmatmul.f32.gmra.mxu0 %v203
        %v225 = vpop.f32.mrf.mxu0
        %v226 = vadd.f32 0.0, %v225
        %227 = vmatmul.f32.gmra.mxu0 %v206
        %v228 = vpop.f32.mrf.mxu0
        %v229 = vadd.f32 0.0, %v228
        %230 = vdwg.mxu0
        %231 = vmatpush.msra.mxu0 0.0
        %232 = vmatpush.msra.mxu0 0.0
        %233 = vmatpush.msra.mxu0 0.0
        %234 = vmatpush.msra.mxu0 0.0
        %235 = vmatpush.msra.mxu0 0.0
        %236 = vmatpush.msra.mxu0 0.0
        %237 = vmatpush.msra.mxu0 0.0
        %238 = vmatpush.msra.mxu0 0.0
        %239 = vmatpush.msra.mxu0 %v200
        %240 = vmatpush.msra.mxu0 %v198
        %241 = vmatpush.msra.mxu0 %v196
        %242 = vmatpush.msra.mxu0 %v194
        %243 = vmatpush.msra.mxu0 %v192
        %244 = vmatpush.msra.mxu0 %v190
        %245 = vmatpush.msra.mxu0 %v188
        %246 = vmatpush.msra.mxu0 %v186
        %247 = vmatmul.f32.gmra.mxu0 %v203
        %v248 = vpop.f32.mrf.mxu0
        %v249 = vadd.f32 0.0, %v248
        %250 = vmatmul.f32.gmra.mxu0 %v206
        %v251 = vpop.f32.mrf.mxu0
        %v252 = vadd.f32 0.0, %v251
        %253 = vdwg.mxu0
        %254 = vst [vmem:[%s180] sm:$0xff] %v226
        %255 = vst [vmem:[%s180 + $0x8] sm:$0xff] %v249
        %256 = vst [vmem:[%s180 + $0x10] sm:$0xff] %v229
        %257 = vst [vmem:[%s180 + $0x18] sm:$0xff] %v252
        %s258 = sand.u32 %s75, 1
        %s259 = scalar_lea.sflag [#allocation4], %s258
        %s260 = sand.u32 %s75, 1
        %s261 = smul.addr %s260, 32
        %s262 = scalar_lea.vmem [#allocation7], %s261
        // Predicated region
        $region37: #{tpu_custom_call.1} parent=27 // pred_check
          %p263 = pneg %p85
        $region38: #{tpu_custom_call.1} parent=27 // pred_check_branch
          %265 = sbr.rel (%p263) target = $region40
        $region39: #{tpu_custom_call.1} parent=27 // pred_region
          %s266 = smul.u32 2, %s20
          %268 = vsyncadd %s259, 0
          %s269 = smul.addr %s266, 2
          %s270 = smul.addr %s269, 8
          %s271 = scalar_lea.hbm %s2, %s270
          %s272 = sshll.u32 %s262, 4
          %s273 = int_to_ptr.vmem [resolvable:$true] %s272
          %s274 = sshll.u32 %s271, 4
          %s275 = int_to_ptr.hbm [resolvable:$true] %s274
          %280 = dma.vmem_to_hbm [thread:$0]  %s273, 512, %s275, %s259, 256, 256, 16
        $region40: #{tpu_custom_call.1} parent=27 // pred_fallthru
          _
      $region28: #{tpu_custom_call.1} parent=5 // pred_fallthru
        _
      %p281 = scmp.le.s32.totalorder 2, %s15
      // Predicated region
      $region41: #{tpu_custom_call.1} parent=5 // pred_check
        %p282 = pneg %p281
      $region42: #{tpu_custom_call.1} parent=5 // pred_check_branch
        %284 = sbr.rel (%p282) target = $region44
      $region43: #{tpu_custom_call.1} parent=5 // pred_region
        %s285 = ssub.s32 %s15, 2
        // Predicated region
        $region45: #{tpu_custom_call.1} parent=43 // pred_check
          %p286 = pneg %p91
        $region46: #{tpu_custom_call.1} parent=43 // pred_check_branch
          %288 = sbr.rel (%p286) target = $region48
        $region47: #{tpu_custom_call.1} parent=43 // pred_region
          %s289 = sand.u32 %s76, 1
          %s290 = scalar_lea.sflag [#allocation4], %s289
          %s291 = sand.u32 %s76, 1
          %s292 = smul.addr %s291, 32
          %s293 = scalar_lea.vmem [#allocation7], %s292
          %295 = dma.done %s290, 512
        $region48: #{tpu_custom_call.1} parent=43 // pred_fallthru
          _
      $region44: #{tpu_custom_call.1} parent=5 // pred_fallthru
        _
    $region6: #{tpu_custom_call.1} parent=1 // loop_footer
      %s19 = sadd.s32 1, %s15
    $region7: #{tpu_custom_call.1} parent=1 // loop_footer_branch
      %14 = sbr.rel target = $region3
    $region8: #{tpu_custom_call.1} parent=1 // loop_exit
      _
    %296 = vsyncpa [#allocation3], 1
    %s297 = scalar_lea.sflag [#allocation3], 1
    %298 = vsyncpa %s297, 1
    %299 = vsyncpa [#allocation6], 1
    %300 = vsyncpa [#allocation4], 1
    %s301 = scalar_lea.sflag [#allocation4], 1
    %302 = vsyncpa %s301, 1

</llo_original>
